<compile_context>
chip_gen: v6e
topology: v6e:2x2x1
jax: 0.10.0
libtpu: 0.0.40
codegen_flags: <defaults>
</compile_context>

<pallas_src>
import functools
import math

import jax
import jax.numpy as jnp
from jax.experimental import pallas as pl
from jax.experimental.pallas import tpu as pltpu


def _dice_kernel(x_ref, t_ref, o_ref, inter_acc, sum_acc, *,
                 smooth, rows_total, tr, masked):
    # x_ref / t_ref: (TB, TR, 128) tiles in native dtype.
    r = pl.program_id(1)

    @pl.when(r == 0)
    def _():
        inter_acc[...] = jnp.zeros_like(inter_acc)
        sum_acc[...] = jnp.zeros_like(sum_acc)

    x = x_ref[...].astype(jnp.float32)
    t = t_ref[...].astype(jnp.float32)
    prod = x * t
    both = x + t           # fold s_x + s_t into a single reduction
    if masked:
        # Last R-chunk is partial: zero out rows past the real extent so the
        # (unspecified) out-of-bounds data never reaches the accumulators.
        row = jax.lax.broadcasted_iota(jnp.int32, x.shape, 1)
        valid = (r * tr + row) < rows_total
        prod = jnp.where(valid, prod, 0.0)
        both = jnp.where(valid, both, 0.0)

    # Lane-wise partials: reduce only over the sublane (row) axis per tile.
    inter_acc[...] += jnp.sum(prod, axis=1)   # (TB, 128)
    sum_acc[...] += jnp.sum(both, axis=1)     # (TB, 128)

    @pl.when(r == pl.num_programs(1) - 1)
    def _():
        inter = jnp.sum(inter_acc[...], axis=-1, keepdims=True)  # (TB, 1)
        s = jnp.sum(sum_acc[...], axis=-1, keepdims=True)        # (TB, 1)
        dice = 1.0 - (2.0 * inter + smooth) / (s + smooth)
        # Lane-dense scalar broadcast; wrapper reads column 0.
        o_ref[...] = jnp.broadcast_to(dice, o_ref.shape).astype(o_ref.dtype)


def dice_loss(inputs, targets, smooth=0.001):
    """inputs: (B, ...), targets: (B, ...) with equal flattened per-sample size."""
    B = inputs.shape[0]
    n_in = math.prod(inputs.shape[1:]) if inputs.ndim > 1 else 1
    n_t = math.prod(targets.shape[1:]) if targets.ndim > 1 else 1
    assert n_in == n_t, "per-sample flattened sizes of inputs and targets must match"
    N = n_in

    xf = inputs.reshape(B, N)
    tf = targets.reshape(B, N)

    # Only pad when the flattened sample is not lane-aligned (zeros are
    # sum-neutral).  For typical voxel volumes this path is never taken, so no
    # extra HBM pass is paid.
    pad = (-N) % 128
    if pad:
        xf = jnp.pad(xf, ((0, 0), (0, pad)))
        tf = jnp.pad(tf, ((0, 0), (0, pad)))
    R = (N + pad) // 128
    xf = xf.reshape(B, R, 128)   # free bitcast under jit
    tf = tf.reshape(B, R, 128)

    # Batch rows per grid step: whole batch if small, else multiples of 8
    # (keeps the (TB, 128) output block layout-legal).
    TB = B if B <= 8 else 8
    gb = -(-B // TB)

    # Rows per R-chunk: target ~1 MiB per input block (2 inputs x 2 buffers
    # stays well under every scoped-VMEM default, including v7x's 64 MiB VMEM).
    bytes_per = max(xf.dtype.itemsize, tf.dtype.itemsize, 1)
    tr = max(8, (1 << 20) // (TB * 128 * bytes_per))
    tr = (tr // 8) * 8
    TR = R if tr >= R else tr
    gr = -(-R // TR)
    masked = (R % TR) != 0

    kernel = functools.partial(
        _dice_kernel, smooth=float(smooth), rows_total=R, tr=TR, masked=masked)

    per_sample = pl.pallas_call(
        kernel,
        out_shape=jax.ShapeDtypeStruct((B, 128), jnp.float32),
        grid_spec=pltpu.PrefetchScalarGridSpec(
            num_scalar_prefetch=0,
            grid=(gb, gr),
            in_specs=[
                pl.BlockSpec((TB, TR, 128), lambda b, r: (b, r, 0)),
                pl.BlockSpec((TB, TR, 128), lambda b, r: (b, r, 0)),
            ],
            out_specs=pl.BlockSpec((TB, 128), lambda b, r: (b, 0)),
            scratch_shapes=[
                pltpu.VMEM((TB, 128), jnp.float32),   # intersection partials
                pltpu.VMEM((TB, 128), jnp.float32),   # (x + t) partials
            ],
        ),
        compiler_params=pltpu.CompilerParams(
            dimension_semantics=("parallel", "arbitrary")),
    )(xf, tf)

    # reduction='mean' over the batch (tiny, left in plain JAX glue).
    return jnp.mean(per_sample[:, 0])


def dice_loss_ref(inputs, targets, smooth=0.001):
    B = inputs.shape[0]
    iflat = inputs.reshape(B, -1).astype(jnp.float32)
    tflat = targets.reshape(B, -1).astype(jnp.float32)
    inter = jnp.sum(iflat * tflat, axis=-1)
    loss = 1.0 - (2.0 * inter + smooth) / (
        jnp.sum(iflat, axis=-1) + jnp.sum(tflat, axis=-1) + smooth)
    return jnp.mean(loss)


if __name__ == "__main__":
    # Shapes per the module docstring: inputs (B, 1, Z, X, Y), targets (B, Z, X, Y).
    B, Z, X, Y = 2, 8, 16, 16
    key = jax.random.PRNGKey(0)
    k1, k2 = jax.random.split(key)
    inputs = jax.random.uniform(k1, (B, 1, Z, X, Y), dtype=jnp.float32)
    targets = (jax.random.uniform(k2, (B, Z, X, Y)) > 0.5).astype(jnp.float32)

    out = dice_loss(inputs, targets, smooth=0.001)
    out = jax.block_until_ready(out)

    ref = dice_loss_ref(inputs, targets, smooth=0.001)
    assert jnp.allclose(out, ref, atol=1e-5, rtol=1e-5), (out, ref)

    # Also exercise the tiled / masked path (R not a multiple of TR is forced
    # by a larger volume) to make sure the accumulator pipeline is correct.
    B2, Z2, X2, Y2 = 3, 24, 40, 40
    k3, k4 = jax.random.split(k2)
    inputs2 = jax.random.uniform(k3, (B2, 1, Z2, X2, Y2), dtype=jnp.float32)
    targets2 = (jax.random.uniform(k4, (B2, Z2, X2, Y2)) > 0.5).astype(jnp.float32)
    out2 = jax.block_until_ready(dice_loss(inputs2, targets2, smooth=0.001))
    ref2 = dice_loss_ref(inputs2, targets2, smooth=0.001)
    assert jnp.allclose(out2, ref2, atol=1e-5, rtol=1e-5), (out2, ref2)

    print("KERNEL_OK")
</pallas_src>

<mosaic_0001>
module attributes {stable_mosaic.version = 11 : i64} {
  func.func @_dice_kernel(%arg0: i32, %arg1: i32, %arg2: memref<2x16x128xf32, #tpu.memory_space<vmem>>, %arg3: memref<2x16x128xf32, #tpu.memory_space<vmem>>, %arg4: memref<2x128xf32, #tpu.memory_space<vmem>>, %arg5: memref<2x128xf32, #tpu.memory_space<vmem>>, %arg6: memref<2x128xf32, #tpu.memory_space<vmem>>) attributes {dimension_semantics = [#tpu.dimension_semantics<parallel>, #tpu.dimension_semantics<arbitrary>], iteration_bounds = array<i64: 1, 1>, scalar_prefetch = 0 : i64, scratch_operands = 2 : i64, tpu.core_type = #tpu.core_type<tc>, window_params = [{transform_indices = @transform_0, window_bounds = array<i64: 2, 16, 128>}, {transform_indices = @transform_1, window_bounds = array<i64: 2, 16, 128>}, {transform_indices = @transform_2, window_bounds = array<i64: 2, 128>}]} {
    %c0_i32 = arith.constant 0 : i32
    %0 = arith.cmpi eq, %arg1, %c0_i32 : i32
    %1 = arith.extui %0 : i1 to i32
    %c0_i32_0 = arith.constant 0 : i32
    %2 = arith.cmpi ne, %1, %c0_i32_0 : i32
    scf.if %2 {
      %cst_17 = arith.constant 0.000000e+00 : f32
      %18 = vector.broadcast %cst_17 : f32 to vector<2x128xf32>
      %c0_18 = arith.constant 0 : index
      %c0_19 = arith.constant 0 : index
      %19 = vector.load %arg5[%c0_18, %c0_19] : memref<2x128xf32, #tpu.memory_space<vmem>>, vector<2x128xf32>
      tpu.vector_store %arg5[%c0_18, %c0_19], %18 {strides = array<i32>} : memref<2x128xf32, #tpu.memory_space<vmem>>, vector<2x128xf32>,
      %cst_20 = arith.constant 0.000000e+00 : f32
      %20 = vector.broadcast %cst_20 : f32 to vector<2x128xf32>
      %c0_21 = arith.constant 0 : index
      %c0_22 = arith.constant 0 : index
      %21 = vector.load %arg6[%c0_21, %c0_22] : memref<2x128xf32, #tpu.memory_space<vmem>>, vector<2x128xf32>
      tpu.vector_store %arg6[%c0_21, %c0_22], %20 {strides = array<i32>} : memref<2x128xf32, #tpu.memory_space<vmem>>, vector<2x128xf32>,
    } else {
    }
    %c0 = arith.constant 0 : index
    %c0_1 = arith.constant 0 : index
    %c0_2 = arith.constant 0 : index
    %3 = vector.load %arg2[%c0, %c0_1, %c0_2] : memref<2x16x128xf32, #tpu.memory_space<vmem>>, vector<2x16x128xf32>
    %c0_3 = arith.constant 0 : index
    %c0_4 = arith.constant 0 : index
    %c0_5 = arith.constant 0 : index
    %4 = vector.load %arg3[%c0_3, %c0_4, %c0_5] : memref<2x16x128xf32, #tpu.memory_space<vmem>>, vector<2x16x128xf32>
    %5 = arith.mulf %3, %4 : vector<2x16x128xf32>
    %6 = arith.addf %3, %4 : vector<2x16x128xf32>
    %c0_6 = arith.constant 0 : index
    %c0_7 = arith.constant 0 : index
    %7 = vector.load %arg5[%c0_6, %c0_7] : memref<2x128xf32, #tpu.memory_space<vmem>>, vector<2x128xf32>
    %cst = arith.constant dense<0.000000e+00> : vector<2x128xf32>
    %8 = vector.multi_reduction <add>, %5, %cst [1] : vector<2x16x128xf32> to vector<2x128xf32>
    %9 = arith.addf %7, %8 : vector<2x128xf32>
    %c0_8 = arith.constant 0 : index
    %c0_9 = arith.constant 0 : index
    %10 = vector.load %arg5[%c0_8, %c0_9] : memref<2x128xf32, #tpu.memory_space<vmem>>, vector<2x128xf32>
    tpu.vector_store %arg5[%c0_8, %c0_9], %9 {strides = array<i32>} : memref<2x128xf32, #tpu.memory_space<vmem>>, vector<2x128xf32>,
    %c0_10 = arith.constant 0 : index
    %c0_11 = arith.constant 0 : index
    %11 = vector.load %arg6[%c0_10, %c0_11] : memref<2x128xf32, #tpu.memory_space<vmem>>, vector<2x128xf32>
    %cst_12 = arith.constant dense<0.000000e+00> : vector<2x128xf32>
    %12 = vector.multi_reduction <add>, %6, %cst_12 [1] : vector<2x16x128xf32> to vector<2x128xf32>
    %13 = arith.addf %11, %12 : vector<2x128xf32>
    %c0_13 = arith.constant 0 : index
    %c0_14 = arith.constant 0 : index
    %14 = vector.load %arg6[%c0_13, %c0_14] : memref<2x128xf32, #tpu.memory_space<vmem>>, vector<2x128xf32>
    tpu.vector_store %arg6[%c0_13, %c0_14], %13 {strides = array<i32>} : memref<2x128xf32, #tpu.memory_space<vmem>>, vector<2x128xf32>,
    %c0_i32_15 = arith.constant 0 : i32
    %15 = arith.cmpi eq, %arg1, %c0_i32_15 : i32
    %16 = arith.extui %15 : i1 to i32
    %c0_i32_16 = arith.constant 0 : i32
    %17 = arith.cmpi ne, %16, %c0_i32_16 : i32
    scf.if %17 {
      %c0_17 = arith.constant 0 : index
      %c0_18 = arith.constant 0 : index
      %18 = vector.load %arg5[%c0_17, %c0_18] : memref<2x128xf32, #tpu.memory_space<vmem>>, vector<2x128xf32>
      %cst_19 = arith.constant dense<0.000000e+00> : vector<2xf32>
      %19 = vector.multi_reduction <add>, %18, %cst_19 [1] : vector<2x128xf32> to vector<2xf32>
      %20 = vector.shape_cast %19 : vector<2xf32> to vector<2x1xf32>
      %c0_20 = arith.constant 0 : index
      %c0_21 = arith.constant 0 : index
      %21 = vector.load %arg6[%c0_20, %c0_21] : memref<2x128xf32, #tpu.memory_space<vmem>>, vector<2x128xf32>
      %cst_22 = arith.constant dense<0.000000e+00> : vector<2xf32>
      %22 = vector.multi_reduction <add>, %21, %cst_22 [1] : vector<2x128xf32> to vector<2xf32>
      %23 = vector.shape_cast %22 : vector<2xf32> to vector<2x1xf32>
      %cst_23 = arith.constant 2.000000e+00 : f32
      %24 = vector.broadcast %cst_23 : f32 to vector<2x1xf32>
      %25 = arith.mulf %24, %20 : vector<2x1xf32>
      %cst_24 = arith.constant 1.000000e-03 : f32
      %26 = vector.broadcast %cst_24 : f32 to vector<2x1xf32>
      %27 = arith.addf %25, %26 : vector<2x1xf32>
      %cst_25 = arith.constant 1.000000e-03 : f32
      %28 = vector.broadcast %cst_25 : f32 to vector<2x1xf32>
      %29 = arith.addf %23, %28 : vector<2x1xf32>
      %30 = arith.divf %27, %29 : vector<2x1xf32>
      %cst_26 = arith.constant 1.000000e+00 : f32
      %31 = vector.broadcast %cst_26 : f32 to vector<2x1xf32>
      %32 = arith.subf %31, %30 : vector<2x1xf32>
      %33 = vector.shape_cast %32 : vector<2x1xf32> to vector<2x1xf32>
      %34 = vector.broadcast %33 : vector<2x1xf32> to vector<2x128xf32>
      %c0_27 = arith.constant 0 : index
      %c0_28 = arith.constant 0 : index
      %35 = vector.load %arg4[%c0_27, %c0_28] : memref<2x128xf32, #tpu.memory_space<vmem>>, vector<2x128xf32>
      tpu.vector_store %arg4[%c0_27, %c0_28], %34 {strides = array<i32>} : memref<2x128xf32, #tpu.memory_space<vmem>>, vector<2x128xf32>,
    } else {
    }
    return
  }
  func.func @transform_0(%arg0: i32, %arg1: i32) -> (i32, i32, i32) {
    %c0_i32 = arith.constant 0 : i32
    %c0_i32_0 = arith.constant 0 : i32
    return %arg0, %arg1, %c0_i32 : i32, i32, i32
  }
  func.func @transform_1(%arg0: i32, %arg1: i32) -> (i32, i32, i32) {
    %c0_i32 = arith.constant 0 : i32
    %c0_i32_0 = arith.constant 0 : i32
    return %arg0, %arg1, %c0_i32 : i32, i32, i32
  }
  func.func @transform_2(%arg0: i32, %arg1: i32) -> (i32, i32) {
    %c0_i32 = arith.constant 0 : i32
    %c0_i32_0 = arith.constant 0 : i32
    return %arg0, %c0_i32 : i32, i32
  }
}

</mosaic_0001>

<llo_original>
// kernel: tpu_custom_call.1
$region0: #{tpu_custom_call.1}
  #allocation0 [shape = 'u32[]', space=smem, size = 0x4, offset = 0x4, fixed_abs, tag = 'smem constant byte address 0x4 - core index']
  #allocation1 [shape = 'u32[144,128]{1,0:T(1,128)}', space=vmem, size = 0x12000, scoped, tag = 'internal scratch']
  #allocation2 [shape = 'f32[2,128]{1,0:T(2,128)}', space=vmem, size = 0x400, scoped, tag = 'scratch operand']
  #allocation3 [shape = 'f32[2,128]{1,0:T(2,128)}', space=vmem, size = 0x400, scoped, tag = 'scratch operand']
  %s0 = inlined_call_operand.hbm [shape: f32[2,16,128], index: 0, kind: input, shape index: {}]
  %s1 = inlined_call_operand.hbm [shape: f32[2,16,128], index: 1, kind: input, shape index: {}]
  %s2 = inlined_call_operand.hbm [shape: f32[2,128], index: 2, kind: output, shape index: {}]
  %s3 = sld [smem:[#allocation0]]
  $region34: #{tpu_custom_call.1} parent=0
    _
  %s5 = ssub.s32 1, %s3
  %s6 = scalar_select 0, %s5, %s3
  $region1: #{tpu_custom_call.1} parent=0
    #allocation4 [shape = 'u8[16384]{0}', space=vmem, size = 0x4000, scoped, tag = 'input window, operand 0, single buffered']
    #allocation5 [shape = 's32[1]{0}', space=sflag, size = 0x4, scoped, tag = 'scoped memory for tpu_custom_call.1']
    #allocation6 [shape = 's32[1]{0}', space=sflag, size = 0x4, scoped, tag = 'scoped memory for tpu_custom_call.1']
    #allocation7 [shape = 'u8[16384]{0}', space=vmem, size = 0x4000, scoped, tag = 'input window, operand 1, single buffered']
    #allocation8 [shape = 's32[1]{0}', space=sflag, size = 0x4, scoped, tag = 'scoped memory for tpu_custom_call.1']
    #allocation9 [shape = 'u8[1024]{0}', space=vmem, size = 0x400, scoped, tag = 'output window, operand 0, single buffered']
    %7 = vsyncpa [#allocation5], 0
    %8 = vsyncpa [#allocation8], 0
    %9 = vsyncpa [#allocation6], 0
    // Predicated region
    $region2: #{tpu_custom_call.1} parent=1 // pred_check
      _
    $region3: #{tpu_custom_call.1} parent=1 // pred_check_branch
      %11 = sbr.rel (0) target = $region5
    $region4: #{tpu_custom_call.1} parent=1 // pred_region
      %s13 = ssub.s32 512, 512
      %14 = vsyncadd [#allocation5], %s13
      %s15 = sshll.u32 [#allocation4], 4
      %s16 = int_to_ptr.vmem [resolvable:$true] %s15
      %21 = dma.hbm_to_vmem [thread:$0]  %s0, 512, %s16, [#allocation5], 128, 128, 8
    $region5: #{tpu_custom_call.1} parent=1 // pred_fallthru
      _
    // Predicated region
    $region6: #{tpu_custom_call.1} parent=1 // pred_check
      _
    $region7: #{tpu_custom_call.1} parent=1 // pred_check_branch
      %23 = sbr.rel (0) target = $region9
    $region8: #{tpu_custom_call.1} parent=1 // pred_region
      %s25 = ssub.s32 512, 512
      %26 = vsyncadd [#allocation8], %s25
      %s27 = sshll.u32 [#allocation7], 4
      %s28 = int_to_ptr.vmem [resolvable:$true] %s27
      %33 = dma.hbm_to_vmem [thread:$0]  %s1, 512, %s28, [#allocation8], 128, 128, 8
    $region9: #{tpu_custom_call.1} parent=1 // pred_fallthru
      _
    // Predicated region
    $region10: #{tpu_custom_call.1} parent=1 // pred_check
      _
    $region11: #{tpu_custom_call.1} parent=1 // pred_check_branch
      %35 = sbr.rel (0) target = $region13
    $region12: #{tpu_custom_call.1} parent=1 // pred_region
      %36 = dma.done [#allocation5], 512
    $region13: #{tpu_custom_call.1} parent=1 // pred_fallthru
      _
    // Predicated region
    $region14: #{tpu_custom_call.1} parent=1 // pred_check
      _
    $region15: #{tpu_custom_call.1} parent=1 // pred_check_branch
      %38 = sbr.rel (0) target = $region17
    $region16: #{tpu_custom_call.1} parent=1 // pred_region
      %39 = dma.done [#allocation8], 512
    $region17: #{tpu_custom_call.1} parent=1 // pred_fallthru
      _
    %p40 = scmp.eq.s32.totalorder 0, 0
    // Predicated region
    $region18: #{tpu_custom_call.1} parent=1 // pred_check
      %p41 = pneg %p40
    $region19: #{tpu_custom_call.1} parent=1 // pred_check_branch
      %43 = sbr.rel (%p41) target = $region21
    $region20: #{tpu_custom_call.1} parent=1 // pred_region
      %44 = vst [vmem:[#allocation2] sm:$0x3] 0.0
      %45 = vst [vmem:[#allocation3] sm:$0x3] 0.0
    $region21: #{tpu_custom_call.1} parent=1 // pred_fallthru
      _
    %v46 = vld [vmem:[#allocation4] sm:$0xff]
    %v47 = vld [vmem:[#allocation4 + $0x8] sm:$0xff]
    %v48 = vld [vmem:[#allocation4 + $0x10] sm:$0xff]
    %v49 = vld [vmem:[#allocation4 + $0x18] sm:$0xff]
    %v50 = vld [vmem:[#allocation7] sm:$0xff]
    %v51 = vld [vmem:[#allocation7 + $0x8] sm:$0xff]
    %v52 = vld [vmem:[#allocation7 + $0x10] sm:$0xff]
    %v53 = vld [vmem:[#allocation7 + $0x18] sm:$0xff]
    %v54 = vmul.f32 %v46, %v50
    %v55 = vmul.f32 %v47, %v51
    %v56 = vmul.f32 %v48, %v52
    %v57 = vmul.f32 %v49, %v53
    %v58 = vadd.f32 %v46, %v50
    %v59 = vadd.f32 %v47, %v51
    %v60 = vadd.f32 %v48, %v52
    %v61 = vadd.f32 %v49, %v53
    %v62 = vld [vmem:[#allocation2] sm:$0x3]
    %v63 = vadd.f32 %v54, %v55
    %v64 = vrot.slane %v63, 4
    %v65 = vadd.f32 %v63, %v64
    %v66 = vrot.slane %v65, 2
    %v67 = vadd.f32 %v65, %v66
    %v68 = vrot.slane %v67, 1
    %v69 = vadd.f32 %v67, %v68
    %v70 = vadd.f32 %v56, %v57
    %v71 = vrot.slane %v70, 4
    %v72 = vadd.f32 %v70, %v71
    %v73 = vrot.slane %v72, 2
    %v74 = vadd.f32 %v72, %v73
    %v75 = vrot.slane %v74, 1
    %v76 = vadd.f32 %v74, %v75
    %vm79 = vcmask 1041409
    %v80 = vsel %vm79, %v76, %v69
    %v82 = vadd.f32 %v62, %v80
    %83 = vst [vmem:[#allocation2] sm:$0x3] %v82
    %v84 = vld [vmem:[#allocation3] sm:$0x3]
    %v85 = vadd.f32 %v58, %v59
    %v86 = vrot.slane %v85, 4
    %v87 = vadd.f32 %v85, %v86
    %v88 = vrot.slane %v87, 2
    %v89 = vadd.f32 %v87, %v88
    %v90 = vrot.slane %v89, 1
    %v91 = vadd.f32 %v89, %v90
    %v92 = vadd.f32 %v60, %v61
    %v93 = vrot.slane %v92, 4
    %v94 = vadd.f32 %v92, %v93
    %v95 = vrot.slane %v94, 2
    %v96 = vadd.f32 %v94, %v95
    %v97 = vrot.slane %v96, 1
    %v98 = vadd.f32 %v96, %v97
    %v101 = vsel %vm79, %v98, %v91
    %v103 = vadd.f32 %v84, %v101
    %104 = vst [vmem:[#allocation3] sm:$0x3] %v103
    // Predicated region
    $region22: #{tpu_custom_call.1} parent=1 // pred_check
      %p105 = pneg %p40
    $region23: #{tpu_custom_call.1} parent=1 // pred_check_branch
      %107 = sbr.rel (%p105) target = $region25
    $region24: #{tpu_custom_call.1} parent=1 // pred_region
      %v108 = vld [vmem:[#allocation2] sm:$0x3]
      %vm109 = vcmask 1041408
      %v110 = vsel %vm109, %v108, 0.0
      %111 = vadd.xlane.f32.xlu0 %v110
      %v112 = vpop.xlane.xlu0 %111
      %v113 = vld [vmem:[#allocation3] sm:$0x3]
      %v114 = vsel %vm109, %v113, 0.0
      %115 = vadd.xlane.f32.xlu0 %v114
      %v116 = vpop.xlane.xlu0 %115
      %v117 = vmul.f32 %v112, 2.0
      %v118 = vadd.f32 %v117, 0.001
      %v119 = vadd.f32 %v116, 0.001
      %v120 = vrcp.pop %v119
      %v121 = vmul.f32 %v118, %v120
      %v122 = vsub.f32 1.0, %v121
      %123 = vst [vmem:[#allocation9] sm:$0x3] %v122
    $region25: #{tpu_custom_call.1} parent=1 // pred_fallthru
      _
    // Predicated region
    $region26: #{tpu_custom_call.1} parent=1 // pred_check
      _
    $region27: #{tpu_custom_call.1} parent=1 // pred_check_branch
      %125 = sbr.rel (0) target = $region29
    $region28: #{tpu_custom_call.1} parent=1 // pred_region
      %s127 = ssub.s32 32, 32
      %128 = vsyncadd [#allocation6], %s127
      %s130 = sshll.u32 [#allocation9], 4
      %s131 = int_to_ptr.vmem [resolvable:$true] %s130
      %133 = dma.vmem_to_hbm [thread:$0]  %s131, 32, %s2, [#allocation6]
    $region29: #{tpu_custom_call.1} parent=1 // pred_fallthru
      _
    // Predicated region
    $region30: #{tpu_custom_call.1} parent=1 // pred_check
      _
    $region31: #{tpu_custom_call.1} parent=1 // pred_check_branch
      %135 = sbr.rel (0) target = $region33
    $region32: #{tpu_custom_call.1} parent=1 // pred_region
      %136 = dma.done [#allocation6], 32
    $region33: #{tpu_custom_call.1} parent=1 // pred_fallthru
      _
    %137 = vsyncpa [#allocation5], 1
    %138 = vsyncpa [#allocation8], 1
    %139 = vsyncpa [#allocation6], 1

</llo_original>
